<compile_context>
chip_gen: v5e
topology: v5e:2x2
jax: 0.10.0
libtpu: 0.0.40
codegen_flags: <defaults>
</compile_context>

<pallas_src>
import math
import functools

import jax
import jax.numpy as jnp
from jax.experimental import pallas as pl
from jax.experimental.pallas import tpu as pltpu


def _round_up(v, m):
    return ((v + m - 1) // m) * m


# ----------------------------------------------------------------------------
# Fused kernel
# ----------------------------------------------------------------------------

def _gcnii_fused_kernel(x_ref, adj_ref, w0_ref, b0_ref, wc_ref, w1_ref, b1_ref,
                        o_ref, h_even, h_odd, ah0,
                        *, alpha, n_layers, tm):
    l = pl.program_id(0)            # 0: in-linear, 1..L: conv layers, L+1: out-linear
    i = pl.program_id(1)            # node-row tile
    row = pl.multiple_of(i * tm, tm)
    rows = pl.ds(row, tm)

    # ---- layer 0: h0 = relu(x @ W0 + b0); keep h0 (pre-scaled by alpha) resident
    @pl.when(l == 0)
    def _():
        h = jnp.dot(x_ref[...], w0_ref[...], preferred_element_type=jnp.float32)
        h = jnp.maximum(h + b0_ref[...], 0.0)
        h_even[rows, :] = h
        ah0[rows, :] = alpha * h                 # alpha * h0, computed once

    # ---- conv layers: h <- relu(((1-a)*(adj @ h) + a*h0) @ W')  (W' pre-folded)
    def conv(src, dst):
        hi = jnp.dot(adj_ref[...], src[...], preferred_element_type=jnp.float32)
        support = (1.0 - alpha) * hi + ah0[rows, :]
        out = jnp.dot(support, wc_ref[0], preferred_element_type=jnp.float32)
        dst[rows, :] = jnp.maximum(out, 0.0)

    is_conv = jnp.logical_and(l >= 1, l <= n_layers)

    @pl.when(jnp.logical_and(is_conv, l % 2 == 1))
    def _():
        conv(h_even, h_odd)          # odd layers read even slot, write odd slot

    @pl.when(jnp.logical_and(is_conv, l % 2 == 0))
    def _():
        conv(h_odd, h_even)          # even layers read odd slot, write even slot

    # ---- final linear: out = h @ W1 + b1  (lane-dense padded output block)
    @pl.when(l == n_layers + 1)
    def _():
        h_last = h_even if n_layers % 2 == 0 else h_odd   # static (Python) choice
        out = jnp.dot(h_last[rows, :], w1_ref[...],
                      preferred_element_type=jnp.float32)
        o_ref[rows, :] = out + b1_ref[...]


# ----------------------------------------------------------------------------
# Wrapper
# ----------------------------------------------------------------------------

def gcnii_forward(x, adj, params, *, lamda, alpha, tm=256):
    """GCNII.forward (inference: dropout = identity), fused Pallas kernel."""
    n, nfeat = x.shape
    nhidden = params["fc0_w"].shape[1]
    nclass = params["fc1_w"].shape[1]
    n_layers = len(params["conv_ws"])

    f32 = jnp.float32
    tm = min(tm, _round_up(n, 8))           # row tile (multiple of 8)
    n_pad = _round_up(n, tm)
    f0_pad = _round_up(nfeat, 128)          # lane-dense feature dims
    h_pad = _round_up(nhidden, 128)
    c_pad = _round_up(nclass, 128)
    n_tiles = n_pad // tm

    # ---- zero-padded inputs / parameters (padding is provably inert) -------
    x_p = jnp.zeros((n_pad, f0_pad), f32).at[:n, :nfeat].set(x.astype(f32))
    adj_p = jnp.zeros((n_pad, n_pad), f32).at[:n, :n].set(adj.astype(f32))
    w0_p = jnp.zeros((f0_pad, h_pad), f32).at[:nfeat, :nhidden].set(params["fc0_w"])
    b0_p = jnp.zeros((1, h_pad), f32).at[:, :nhidden].set(params["fc0_b"])
    w1_p = jnp.zeros((h_pad, c_pad), f32).at[:nhidden, :nclass].set(params["fc1_w"])
    b1_p = jnp.zeros((1, c_pad), f32).at[:, :nclass].set(params["fc1_b"])

    # ---- fold residual term into the weight: W'_i = theta_i*W_i + (1-theta_i)*I
    eye = jnp.eye(nhidden, dtype=f32)
    if n_layers > 0:
        folded = []
        for i, w in enumerate(params["conv_ws"]):
            theta = math.log(lamda / (i + 1) + 1.0)
            folded.append(theta * w + (1.0 - theta) * eye)
        wc = jnp.stack(folded)                      # [L, H, H]
    else:
        wc = jnp.zeros((1, nhidden, nhidden), f32)  # dummy (never used)
    wc_p = jnp.zeros((wc.shape[0], h_pad, h_pad), f32) \
              .at[:, :nhidden, :nhidden].set(wc)
    last_w = wc.shape[0] - 1

    grid = (n_layers + 2, n_tiles)

    # ---- BlockSpec index maps tuned to avoid redundant HBM traffic ---------
    # x is only consumed at l == 0; pin the index afterwards (to the tile that
    # is already resident) so no further x DMAs are issued.
    x_idx = lambda l, i: (jnp.where(l == 0, i, n_tiles - 1), 0)
    # adj is only consumed on conv layers. Pin block 0 on layer 0 (it is what
    # layer 1 needs first -> no refetch at the transition) and pin the last
    # tile on the final linear layer (already resident -> no refetch at all).
    if n_layers == 0:
        adj_idx = lambda l, i: (0, 0)
    else:
        adj_idx = lambda l, i: (
            jnp.where(l == 0, 0,
                      jnp.where(l <= n_layers, i, n_tiles - 1)), 0)
    # per-layer folded conv weight; clip keeps l=0 / l=L+1 on an already
    # resident block so no extra weight DMAs happen on those layers.
    wc_idx = lambda l, i: (jnp.clip(l - 1, 0, last_w), 0, 0)

    # ---- VMEM budget (scratch + double-buffered tiles + resident output) ---
    vmem_est = 4 * (3 * n_pad * h_pad            # h_even, h_odd, alpha*h0
                    + 2 * tm * n_pad             # adj tile (double-buffered)
                    + 2 * tm * f0_pad            # x tile (double-buffered)
                    + 2 * h_pad * h_pad          # conv weight block
                    + f0_pad * h_pad + h_pad
                    + h_pad * c_pad + c_pad
                    + n_pad * c_pad)             # resident output
    vmem_limit = int(min(max(2 * vmem_est, 16 << 20), 64 << 20))

    out_p = pl.pallas_call(
        functools.partial(_gcnii_fused_kernel, alpha=float(alpha),
                          n_layers=n_layers, tm=tm),
        out_shape=jax.ShapeDtypeStruct((n_pad, c_pad), f32),
        grid_spec=pltpu.PrefetchScalarGridSpec(
            num_scalar_prefetch=0,
            grid=grid,
            in_specs=[
                pl.BlockSpec((tm, f0_pad), x_idx),             # x (layer 0 only)
                pl.BlockSpec((tm, n_pad), adj_idx),            # adj row tiles
                pl.BlockSpec((f0_pad, h_pad), lambda l, i: (0, 0)),  # W0 resident
                pl.BlockSpec((1, h_pad), lambda l, i: (0, 0)),       # b0 resident
                pl.BlockSpec((1, h_pad, h_pad), wc_idx),             # folded W'_l
                pl.BlockSpec((h_pad, c_pad), lambda l, i: (0, 0)),   # W1 resident
                pl.BlockSpec((1, c_pad), lambda l, i: (0, 0)),       # b1 resident
            ],
            # output resident across the whole grid; written back once at the end
            out_specs=pl.BlockSpec((n_pad, c_pad), lambda l, i: (0, 0)),
            scratch_shapes=[
                pltpu.VMEM((n_pad, h_pad), f32),   # h (even slot)
                pltpu.VMEM((n_pad, h_pad), f32),   # h (odd slot)
                pltpu.VMEM((n_pad, h_pad), f32),   # alpha * h0
            ],
        ),
        compiler_params=pltpu.CompilerParams(
            # layer axis is a carried dependency; the row axis also depends on
            # all row tiles of the previous layer via the VMEM h scratch, so
            # both must stay "arbitrary" (scratch is per-core under megacore).
            dimension_semantics=("arbitrary", "arbitrary"),
            vmem_limit_bytes=vmem_limit,
        ),
    )(x_p, adj_p, w0_p, b0_p, wc_p, w1_p, b1_p)

    return out_p[:n, :nclass]


# ----------------------------------------------------------------------------
# Deterministic parameter init (shapes per GCNII.__init__)
# ----------------------------------------------------------------------------

def init_params(key, nfeat, nlayers, nhidden, nclass):
    keys = jax.random.split(key, 4 + nlayers)
    b0 = 1.0 / math.sqrt(nfeat)
    fc0_w = jax.random.uniform(keys[0], (nfeat, nhidden), jnp.float32, -b0, b0)
    fc0_b = jax.random.uniform(keys[1], (1, nhidden), jnp.float32, -b0, b0)
    b1 = 1.0 / math.sqrt(nhidden)
    fc1_w = jax.random.uniform(keys[2], (nhidden, nclass), jnp.float32, -b1, b1)
    fc1_b = jax.random.uniform(keys[3], (1, nclass), jnp.float32, -b1, b1)
    stdv = 1.0 / math.sqrt(nhidden)
    conv_ws = [
        jax.random.uniform(keys[4 + i], (nhidden, nhidden), jnp.float32,
                           -stdv, stdv)
        for i in range(nlayers)
    ]
    return dict(fc0_w=fc0_w, fc0_b=fc0_b, fc1_w=fc1_w, fc1_b=fc1_b,
                conv_ws=conv_ws)


# ----------------------------------------------------------------------------
# Pure-JAX reference (unfolded, matches the PyTorch module, training=False)
# ----------------------------------------------------------------------------

def gcnii_ref(x, adj, params, *, lamda, alpha):
    h = jax.nn.relu(x @ params["fc0_w"] + params["fc0_b"])
    h0 = h
    for i, w in enumerate(params["conv_ws"]):
        theta = math.log(lamda / (i + 1) + 1.0)
        hi = adj @ h
        support = (1.0 - alpha) * hi + alpha * h0
        h = jax.nn.relu(theta * (support @ w) + (1.0 - theta) * support)
    return h @ params["fc1_w"] + params["fc1_b"]


if __name__ == "__main__":
    N, NFEAT, NHIDDEN, NCLASS, NLAYERS = 64, 16, 32, 8, 4
    LAMDA, ALPHA = 0.5, 0.1

    key = jax.random.PRNGKey(0)
    k_x, k_a, k_p = jax.random.split(key, 3)

    x = jax.random.normal(k_x, (N, NFEAT), jnp.float32)
    # symmetric row-normalized dense "adjacency"
    a = jax.random.uniform(k_a, (N, N), jnp.float32)
    a = (a + a.T) * 0.5 + jnp.eye(N, dtype=jnp.float32)
    adj = a / jnp.sum(a, axis=1, keepdims=True)

    params = init_params(k_p, NFEAT, NLAYERS, NHIDDEN, NCLASS)

    out = gcnii_forward(x, adj, params, lamda=LAMDA, alpha=ALPHA)
    out = jax.block_until_ready(out)

    ref = gcnii_ref(x, adj, params, lamda=LAMDA, alpha=ALPHA)
    assert out.shape == (N, NCLASS)
    assert jnp.allclose(out, ref, atol=1e-4, rtol=1e-4), "mismatch vs reference"

    print("KERNEL_OK")
</pallas_src>

<mosaic_0001>
module attributes {stable_mosaic.version = 11 : i64} {
  func.func @_gcnii_fused_kernel(%arg0: i32, %arg1: i32, %arg2: memref<64x128xf32, #tpu.memory_space<vmem>>, %arg3: memref<64x64xf32, #tpu.memory_space<vmem>>, %arg4: memref<128x128xf32, #tpu.memory_space<vmem>>, %arg5: memref<1x128xf32, #tpu.memory_space<vmem>>, %arg6: memref<1x128x128xf32, #tpu.memory_space<vmem>>, %arg7: memref<128x128xf32, #tpu.memory_space<vmem>>, %arg8: memref<1x128xf32, #tpu.memory_space<vmem>>, %arg9: memref<64x128xf32, #tpu.memory_space<vmem>>, %arg10: memref<64x128xf32, #tpu.memory_space<vmem>>, %arg11: memref<64x128xf32, #tpu.memory_space<vmem>>, %arg12: memref<64x128xf32, #tpu.memory_space<vmem>>) attributes {dimension_semantics = [#tpu.dimension_semantics<arbitrary>, #tpu.dimension_semantics<arbitrary>], iteration_bounds = array<i64: 6, 1>, scalar_prefetch = 0 : i64, scratch_operands = 3 : i64, tpu.core_type = #tpu.core_type<tc>, window_params = [{transform_indices = @transform_0, window_bounds = array<i64: 64, 128>}, {transform_indices = @transform_1, window_bounds = array<i64: 64, 64>}, {pipeline_mode = #tpu.pipeline_mode<synchronous>, transform_indices = @transform_2, window_bounds = array<i64: 128, 128>}, {pipeline_mode = #tpu.pipeline_mode<synchronous>, transform_indices = @transform_3, window_bounds = array<i64: 1, 128>}, {transform_indices = @transform_4, window_bounds = array<i64: 1, 128, 128>}, {pipeline_mode = #tpu.pipeline_mode<synchronous>, transform_indices = @transform_5, window_bounds = array<i64: 128, 128>}, {pipeline_mode = #tpu.pipeline_mode<synchronous>, transform_indices = @transform_6, window_bounds = array<i64: 1, 128>}, {pipeline_mode = #tpu.pipeline_mode<synchronous>, transform_indices = @transform_7, window_bounds = array<i64: 64, 128>}]} {
    %c64_i32 = arith.constant 64 : i32
    %0 = arith.muli %arg1, %c64_i32 : i32
    %1 = tpu.assume_multiple %0, 64 : i32
    %c0_i32 = arith.constant 0 : i32
    %2 = arith.cmpi eq, %arg0, %c0_i32 : i32
    %3 = arith.extui %2 : i1 to i32
    %c0_i32_0 = arith.constant 0 : i32
    %4 = arith.cmpi ne, %3, %c0_i32_0 : i32
    scf.if %4 {
      %c0 = arith.constant 0 : index
      %c0_17 = arith.constant 0 : index
      %39 = vector.load %arg2[%c0, %c0_17] : memref<64x128xf32, #tpu.memory_space<vmem>>, vector<64x128xf32>
      %c0_18 = arith.constant 0 : index
      %c0_19 = arith.constant 0 : index
      %40 = vector.load %arg4[%c0_18, %c0_19] : memref<128x128xf32, #tpu.memory_space<vmem>>, vector<128x128xf32>
      %cst = arith.constant dense<0.000000e+00> : vector<64x128xf32>
      %41 = tpu.matmul %39, %40, %cst {dimension_numbers = #tpu.dot_dimension_numbers<[1], [0], [0], [1], [0, 0, 1, 1], [], []>} : vector<64x128xf32>, vector<128x128xf32>, vector<64x128xf32> -> vector<64x128xf32>
      %c0_20 = arith.constant 0 : index
      %c0_21 = arith.constant 0 : index
      %42 = vector.load %arg5[%c0_20, %c0_21] : memref<1x128xf32, #tpu.memory_space<vmem>>, vector<1x128xf32>
      %43 = vector.broadcast %42 : vector<1x128xf32> to vector<64x128xf32>
      %44 = arith.addf %41, %43 : vector<64x128xf32>
      %cst_22 = arith.constant 0.000000e+00 : f32
      %45 = vector.broadcast %cst_22 : f32 to vector<64x128xf32>
      %46 = arith.maximumf %44, %45 : vector<64x128xf32>
      %47 = arith.index_cast %1 : i32 to index
      %c0_23 = arith.constant 0 : index
      %48 = vector.load %arg10[%47, %c0_23] : memref<64x128xf32, #tpu.memory_space<vmem>>, vector<64x128xf32>
      tpu.vector_store %arg10[%47, %c0_23], %46 {strides = array<i32>} : memref<64x128xf32, #tpu.memory_space<vmem>>, vector<64x128xf32>,
      %cst_24 = arith.constant 1.000000e-01 : f32
      %49 = vector.broadcast %cst_24 : f32 to vector<64x128xf32>
      %50 = arith.mulf %49, %46 : vector<64x128xf32>
      %51 = arith.index_cast %1 : i32 to index
      %c0_25 = arith.constant 0 : index
      %52 = vector.load %arg12[%51, %c0_25] : memref<64x128xf32, #tpu.memory_space<vmem>>, vector<64x128xf32>
      tpu.vector_store %arg12[%51, %c0_25], %50 {strides = array<i32>} : memref<64x128xf32, #tpu.memory_space<vmem>>, vector<64x128xf32>,
    } else {
    }
    %c1_i32 = arith.constant 1 : i32
    %5 = arith.cmpi sge, %arg0, %c1_i32 : i32
    %c4_i32 = arith.constant 4 : i32
    %6 = arith.cmpi sle, %arg0, %c4_i32 : i32
    %7 = arith.andi %5, %6 : i1
    %c2_i32 = arith.constant 2 : i32
    %c0_i32_1 = arith.constant 0 : i32
    %8 = arith.cmpi eq, %c2_i32, %c0_i32_1 : i32
    %c1_i32_2 = arith.constant 1 : i32
    %9 = arith.select %8, %c1_i32_2, %c2_i32 : i32
    %10 = arith.remsi %arg0, %9 : i32
    %c0_i32_3 = arith.constant 0 : i32
    %11 = arith.cmpi ne, %10, %c0_i32_3 : i32
    %c0_i32_4 = arith.constant 0 : i32
    %12 = arith.cmpi slt, %10, %c0_i32_4 : i32
    %c0_i32_5 = arith.constant 0 : i32
    %13 = arith.cmpi slt, %9, %c0_i32_5 : i32
    %14 = arith.xori %12, %13 : i1
    %15 = arith.andi %14, %11 : i1
    %16 = arith.addi %10, %9 : i32
    %17 = arith.select %15, %16, %10 : i32
    %c1_i32_6 = arith.constant 1 : i32
    %18 = arith.cmpi eq, %17, %c1_i32_6 : i32
    %19 = arith.andi %7, %18 : i1
    %20 = arith.extui %19 : i1 to i32
    %c0_i32_7 = arith.constant 0 : i32
    %21 = arith.cmpi ne, %20, %c0_i32_7 : i32
    scf.if %21 {
      %c0 = arith.constant 0 : index
      %c0_17 = arith.constant 0 : index
      %39 = vector.load %arg3[%c0, %c0_17] : memref<64x64xf32, #tpu.memory_space<vmem>>, vector<64x64xf32>
      %c0_18 = arith.constant 0 : index
      %c0_19 = arith.constant 0 : index
      %40 = vector.load %arg10[%c0_18, %c0_19] : memref<64x128xf32, #tpu.memory_space<vmem>>, vector<64x128xf32>
      %cst = arith.constant dense<0.000000e+00> : vector<64x128xf32>
      %41 = tpu.matmul %39, %40, %cst {dimension_numbers = #tpu.dot_dimension_numbers<[1], [0], [0], [1], [0, 0, 1, 1], [], []>} : vector<64x64xf32>, vector<64x128xf32>, vector<64x128xf32> -> vector<64x128xf32>
      %cst_20 = arith.constant 0.899999976 : f32
      %42 = vector.broadcast %cst_20 : f32 to vector<64x128xf32>
      %43 = arith.mulf %42, %41 : vector<64x128xf32>
      %44 = arith.index_cast %1 : i32 to index
      %c0_21 = arith.constant 0 : index
      %45 = vector.load %arg12[%44, %c0_21] : memref<64x128xf32, #tpu.memory_space<vmem>>, vector<64x128xf32>
      %46 = arith.addf %43, %45 : vector<64x128xf32>
      %c0_22 = arith.constant 0 : index
      %c0_23 = arith.constant 0 : index
      %c0_24 = arith.constant 0 : index
      %47 = vector.load %arg6[%c0_22, %c0_23, %c0_24] : memref<1x128x128xf32, #tpu.memory_space<vmem>>, vector<1x128x128xf32>
      %48 = vector.shape_cast %47 : vector<1x128x128xf32> to vector<128x128xf32>
      %cst_25 = arith.constant dense<0.000000e+00> : vector<64x128xf32>
      %49 = tpu.matmul %46, %48, %cst_25 {dimension_numbers = #tpu.dot_dimension_numbers<[1], [0], [0], [1], [0, 0, 1, 1], [], []>} : vector<64x128xf32>, vector<128x128xf32>, vector<64x128xf32> -> vector<64x128xf32>
      %cst_26 = arith.constant 0.000000e+00 : f32
      %50 = vector.broadcast %cst_26 : f32 to vector<64x128xf32>
      %51 = arith.maximumf %49, %50 : vector<64x128xf32>
      %52 = arith.index_cast %1 : i32 to index
      %c0_27 = arith.constant 0 : index
      %53 = vector.load %arg11[%52, %c0_27] : memref<64x128xf32, #tpu.memory_space<vmem>>, vector<64x128xf32>
      tpu.vector_store %arg11[%52, %c0_27], %51 {strides = array<i32>} : memref<64x128xf32, #tpu.memory_space<vmem>>, vector<64x128xf32>,
    } else {
    }
    %c2_i32_8 = arith.constant 2 : i32
    %c0_i32_9 = arith.constant 0 : i32
    %22 = arith.cmpi eq, %c2_i32_8, %c0_i32_9 : i32
    %c1_i32_10 = arith.constant 1 : i32
    %23 = arith.select %22, %c1_i32_10, %c2_i32_8 : i32
    %24 = arith.remsi %arg0, %23 : i32
    %c0_i32_11 = arith.constant 0 : i32
    %25 = arith.cmpi ne, %24, %c0_i32_11 : i32
    %c0_i32_12 = arith.constant 0 : i32
    %26 = arith.cmpi slt, %24, %c0_i32_12 : i32
    %c0_i32_13 = arith.constant 0 : i32
    %27 = arith.cmpi slt, %23, %c0_i32_13 : i32
    %28 = arith.xori %26, %27 : i1
    %29 = arith.andi %28, %25 : i1
    %30 = arith.addi %24, %23 : i32
    %31 = arith.select %29, %30, %24 : i32
    %c0_i32_14 = arith.constant 0 : i32
    %32 = arith.cmpi eq, %31, %c0_i32_14 : i32
    %33 = arith.andi %7, %32 : i1
    %34 = arith.extui %33 : i1 to i32
    %c0_i32_15 = arith.constant 0 : i32
    %35 = arith.cmpi ne, %34, %c0_i32_15 : i32
    scf.if %35 {
      %c0 = arith.constant 0 : index
      %c0_17 = arith.constant 0 : index
      %39 = vector.load %arg3[%c0, %c0_17] : memref<64x64xf32, #tpu.memory_space<vmem>>, vector<64x64xf32>
      %c0_18 = arith.constant 0 : index
      %c0_19 = arith.constant 0 : index
      %40 = vector.load %arg11[%c0_18, %c0_19] : memref<64x128xf32, #tpu.memory_space<vmem>>, vector<64x128xf32>
      %cst = arith.constant dense<0.000000e+00> : vector<64x128xf32>
      %41 = tpu.matmul %39, %40, %cst {dimension_numbers = #tpu.dot_dimension_numbers<[1], [0], [0], [1], [0, 0, 1, 1], [], []>} : vector<64x64xf32>, vector<64x128xf32>, vector<64x128xf32> -> vector<64x128xf32>
      %cst_20 = arith.constant 0.899999976 : f32
      %42 = vector.broadcast %cst_20 : f32 to vector<64x128xf32>
      %43 = arith.mulf %42, %41 : vector<64x128xf32>
      %44 = arith.index_cast %1 : i32 to index
      %c0_21 = arith.constant 0 : index
      %45 = vector.load %arg12[%44, %c0_21] : memref<64x128xf32, #tpu.memory_space<vmem>>, vector<64x128xf32>
      %46 = arith.addf %43, %45 : vector<64x128xf32>
      %c0_22 = arith.constant 0 : index
      %c0_23 = arith.constant 0 : index
      %c0_24 = arith.constant 0 : index
      %47 = vector.load %arg6[%c0_22, %c0_23, %c0_24] : memref<1x128x128xf32, #tpu.memory_space<vmem>>, vector<1x128x128xf32>
      %48 = vector.shape_cast %47 : vector<1x128x128xf32> to vector<128x128xf32>
      %cst_25 = arith.constant dense<0.000000e+00> : vector<64x128xf32>
      %49 = tpu.matmul %46, %48, %cst_25 {dimension_numbers = #tpu.dot_dimension_numbers<[1], [0], [0], [1], [0, 0, 1, 1], [], []>} : vector<64x128xf32>, vector<128x128xf32>, vector<64x128xf32> -> vector<64x128xf32>
      %cst_26 = arith.constant 0.000000e+00 : f32
      %50 = vector.broadcast %cst_26 : f32 to vector<64x128xf32>
      %51 = arith.maximumf %49, %50 : vector<64x128xf32>
      %52 = arith.index_cast %1 : i32 to index
      %c0_27 = arith.constant 0 : index
      %53 = vector.load %arg10[%52, %c0_27] : memref<64x128xf32, #tpu.memory_space<vmem>>, vector<64x128xf32>
      tpu.vector_store %arg10[%52, %c0_27], %51 {strides = array<i32>} : memref<64x128xf32, #tpu.memory_space<vmem>>, vector<64x128xf32>,
    } else {
    }
    %c5_i32 = arith.constant 5 : i32
    %36 = arith.cmpi eq, %arg0, %c5_i32 : i32
    %37 = arith.extui %36 : i1 to i32
    %c0_i32_16 = arith.constant 0 : i32
    %38 = arith.cmpi ne, %37, %c0_i32_16 : i32
    scf.if %38 {
      %39 = arith.index_cast %1 : i32 to index
      %c0 = arith.constant 0 : index
      %40 = vector.load %arg10[%39, %c0] : memref<64x128xf32, #tpu.memory_space<vmem>>, vector<64x128xf32>
      %c0_17 = arith.constant 0 : index
      %c0_18 = arith.constant 0 : index
      %41 = vector.load %arg7[%c0_17, %c0_18] : memref<128x128xf32, #tpu.memory_space<vmem>>, vector<128x128xf32>
      %cst = arith.constant dense<0.000000e+00> : vector<64x128xf32>
      %42 = tpu.matmul %40, %41, %cst {dimension_numbers = #tpu.dot_dimension_numbers<[1], [0], [0], [1], [0, 0, 1, 1], [], []>} : vector<64x128xf32>, vector<128x128xf32>, vector<64x128xf32> -> vector<64x128xf32>
      %c0_19 = arith.constant 0 : index
      %c0_20 = arith.constant 0 : index
      %43 = vector.load %arg8[%c0_19, %c0_20] : memref<1x128xf32, #tpu.memory_space<vmem>>, vector<1x128xf32>
      %44 = vector.broadcast %43 : vector<1x128xf32> to vector<64x128xf32>
      %45 = arith.addf %42, %44 : vector<64x128xf32>
      %46 = arith.index_cast %1 : i32 to index
      %c0_21 = arith.constant 0 : index
      %47 = vector.load %arg9[%46, %c0_21] : memref<64x128xf32, #tpu.memory_space<vmem>>, vector<64x128xf32>
      tpu.vector_store %arg9[%46, %c0_21], %45 {strides = array<i32>} : memref<64x128xf32, #tpu.memory_space<vmem>>, vector<64x128xf32>,
    } else {
    }
    return
  }
  func.func @transform_0(%arg0: i32, %arg1: i32) -> (i32, i32) {
    %c0_i32 = arith.constant 0 : i32
    %0 = arith.cmpi eq, %arg0, %c0_i32 : i32
    %c0_i32_0 = arith.constant 0 : i32
    %1 = arith.select %0, %arg1, %c0_i32_0 : i32
    %c0_i32_1 = arith.constant 0 : i32
    %c0_i32_2 = arith.constant 0 : i32
    return %1, %c0_i32_1 : i32, i32
  }
  func.func @transform_1(%arg0: i32, %arg1: i32) -> (i32, i32) {
    %c0_i32 = arith.constant 0 : i32
    %0 = arith.cmpi eq, %arg0, %c0_i32 : i32
    %c4_i32 = arith.constant 4 : i32
    %1 = arith.cmpi sle, %arg0, %c4_i32 : i32
    %c0_i32_0 = arith.constant 0 : i32
    %2 = arith.select %1, %arg1, %c0_i32_0 : i32
    %c0_i32_1 = arith.constant 0 : i32
    %3 = arith.select %0, %c0_i32_1, %2 : i32
    %c0_i32_2 = arith.constant 0 : i32
    %c0_i32_3 = arith.constant 0 : i32
    return %3, %c0_i32_2 : i32, i32
  }
  func.func @transform_2(%arg0: i32, %arg1: i32) -> (i32, i32) {
    %c0_i32 = arith.constant 0 : i32
    %c0_i32_0 = arith.constant 0 : i32
    %c0_i32_1 = arith.constant 0 : i32
    return %c0_i32, %c0_i32_0 : i32, i32
  }
  func.func @transform_3(%arg0: i32, %arg1: i32) -> (i32, i32) {
    %c0_i32 = arith.constant 0 : i32
    %c0_i32_0 = arith.constant 0 : i32
    %c0_i32_1 = arith.constant 0 : i32
    return %c0_i32, %c0_i32_0 : i32, i32
  }
  func.func @transform_4(%arg0: i32, %arg1: i32) -> (i32, i32, i32) {
    %c1_i32 = arith.constant 1 : i32
    %0 = arith.subi %arg0, %c1_i32 : i32
    %c0_i32 = arith.constant 0 : i32
    %c3_i32 = arith.constant 3 : i32
    %1 = arith.maxsi %c0_i32, %0 : i32
    %2 = arith.minsi %c3_i32, %1 : i32
    %c0_i32_0 = arith.constant 0 : i32
    %c0_i32_1 = arith.constant 0 : i32
    %c0_i32_2 = arith.constant 0 : i32
    return %2, %c0_i32_0, %c0_i32_1 : i32, i32, i32
  }
  func.func @transform_5(%arg0: i32, %arg1: i32) -> (i32, i32) {
    %c0_i32 = arith.constant 0 : i32
    %c0_i32_0 = arith.constant 0 : i32
    %c0_i32_1 = arith.constant 0 : i32
    return %c0_i32, %c0_i32_0 : i32, i32
  }
  func.func @transform_6(%arg0: i32, %arg1: i32) -> (i32, i32) {
    %c0_i32 = arith.constant 0 : i32
    %c0_i32_0 = arith.constant 0 : i32
    %c0_i32_1 = arith.constant 0 : i32
    return %c0_i32, %c0_i32_0 : i32, i32
  }
  func.func @transform_7(%arg0: i32, %arg1: i32) -> (i32, i32) {
    %c0_i32 = arith.constant 0 : i32
    %c0_i32_0 = arith.constant 0 : i32
    %c0_i32_1 = arith.constant 0 : i32
    return %c0_i32, %c0_i32_0 : i32, i32
  }
}

</mosaic_0001>

<llo_original>
// kernel: tpu_custom_call.1
$region0: #{tpu_custom_call.1}
  #allocation0 [shape = 'u32[]', space=smem, size = 0x4, offset = 0x4, fixed_abs, tag = 'smem constant byte address 0x4 - core index']
  #allocation1 [shape = 'u32[72,128]{1,0:T(1,128)}', space=vmem, size = 0x9000, scoped, tag = 'internal scratch']
  #allocation2 [shape = 'f32[64,128]{1,0:T(8,128)}', space=vmem, size = 0x8000, scoped, tag = 'scratch operand']
  #allocation3 [shape = 'f32[64,128]{1,0:T(8,128)}', space=vmem, size = 0x8000, scoped, tag = 'scratch operand']
  #allocation4 [shape = 'f32[64,128]{1,0:T(8,128)}', space=vmem, size = 0x8000, scoped, tag = 'scratch operand']
  %s0 = inlined_call_operand.hbm [shape: f32[64,128], index: 0, kind: input, shape index: {}]
  %s1 = inlined_call_operand.hbm [shape: f32[64,64], index: 1, kind: input, shape index: {}]
  %s2 = inlined_call_operand.hbm [shape: f32[128,128], index: 2, kind: input, shape index: {}]
  %s3 = inlined_call_operand.vmem [shape: f32[1,128], index: 3, kind: input, shape index: {}]
  %s4 = inlined_call_operand.hbm [shape: f32[4,128,128], index: 4, kind: input, shape index: {}]
  %s5 = inlined_call_operand.hbm [shape: f32[128,128], index: 5, kind: input, shape index: {}]
  %s6 = inlined_call_operand.vmem [shape: f32[1,128], index: 6, kind: input, shape index: {}]
  %s7 = inlined_call_operand.hbm [shape: f32[64,128], index: 7, kind: output, shape index: {}]
  %s8 = sld [smem:[#allocation0]]
  $region97: #{tpu_custom_call.1} parent=0
    _
  %s10 = ssub.s32 1, %s8
  %s11 = scalar_select 0, %s10, %s8
  $region1: #{tpu_custom_call.1} parent=0
    #allocation5 [shape = 'u8[65536]{0}', space=vmem, size = 0x10000, scoped, tag = 'input window, operand 0']
    #allocation6 [shape = 's32[2]{0}', space=sflag, size = 0x8, scoped, tag = 'scoped memory for tpu_custom_call.1']
    #allocation7 [shape = 's32[2]{0}', space=sflag, size = 0x8, scoped, tag = 'scoped memory for tpu_custom_call.1']
    #allocation8 [shape = 'u8[65536]{0}', space=vmem, size = 0x10000, scoped, tag = 'input window, operand 1']
    #allocation9 [shape = 's32[2]{0}', space=sflag, size = 0x8, scoped, tag = 'scoped memory for tpu_custom_call.1']
    #allocation10 [shape = 'u8[65536]{0}', space=vmem, size = 0x10000, scoped, tag = 'input window, operand 2, single buffered']
    #allocation11 [shape = 'u8[131072]{0}', space=vmem, size = 0x20000, scoped, tag = 'input window, operand 4']
    #allocation12 [shape = 's32[2]{0}', space=sflag, size = 0x8, scoped, tag = 'scoped memory for tpu_custom_call.1']
    #allocation13 [shape = 'u8[65536]{0}', space=vmem, size = 0x10000, scoped, tag = 'input window, operand 5, single buffered']
    #allocation14 [shape = 'u8[32768]{0}', space=vmem, size = 0x8000, scoped, tag = 'output window, operand 0, single buffered']
    %12 = vsyncpa [#allocation6], 0
    %s13 = scalar_lea.sflag [#allocation6], 1
    %14 = vsyncpa %s13, 0
    %15 = vsyncpa [#allocation9], 0
    %s16 = scalar_lea.sflag [#allocation9], 1
    %17 = vsyncpa %s16, 0
    %18 = vsyncpa [#allocation12], 0
    %s19 = scalar_lea.sflag [#allocation12], 1
    %20 = vsyncpa %s19, 0
    %21 = vsyncpa [#allocation7], 0
    loop: start=0, step=1, limit=8
    $region2: #{tpu_custom_call.1} parent=1 // loop_pre_header
      _
    $region3: #{tpu_custom_call.1} parent=1 // loop_header
      %s23 = sphi 0, %s27
      %p24 = scmp.ge.s32.totalorder %s23, 8
      %s30 = sphi 0, %s42
      %s31 = sphi 0, %s38
      %s32 = sphi 0, %s30
      %s33 = sphi 0, %s31
      %s34 = sphi 0, %s32
      %s35 = sphi 0, %s33
      %s49 = sphi 0, %s51
      %s52 = sphi 0, %s49
      %s53 = sphi 0, %s52
      %s69 = sphi 0, %s53
      %s83 = sphi 0, %s85
      %s86 = sphi 0, %s83
      %s87 = sphi 0, %s86
      %s103 = sphi 0, %s87
      %s107 = sphi 0, %s107
      %s109 = sphi 0, %s107
      %s110 = sphi 0, %s109
      %s124 = sphi 0, %s110
      %s128 = sphi 0, %s128
      %s130 = sphi 0, %s128
      %s131 = sphi 0, %s130
      %s145 = sphi 0, %s131
      %s161 = sphi 0, %s163
      %s164 = sphi 0, %s161
      %s165 = sphi 0, %s164
      %s181 = sphi 0, %s165
      %s185 = sphi 0, %s185
      %s187 = sphi 0, %s185
      %s188 = sphi 0, %s187
      %s202 = sphi 0, %s188
      %s206 = sphi 0, %s206
      %s208 = sphi 0, %s206
      %s209 = sphi 0, %s208
      %s223 = sphi 0, %s209
      %s227 = sphi 0, %s227
      %s229 = sphi 0, %s227
      %s230 = sphi 0, %s229
      %s244 = sphi 0, %s230
    $region4: #{tpu_custom_call.1} parent=1 // loop_header_branch
      %26 = sbr.rel (%p24) target = $region8
    $region5: #{tpu_custom_call.1} parent=1 // loop_body
      %s28 = ssub.s32 %s23, 1
      %s29 = ssub.s32 %s23, 2
      %s36 = sadd.s32 1, %s31
      %p37 = scmp.ge.s32.totalorder %s36, 1
      %s38 = scalar_select %p37, 0, %s36
      %s39 = sadd.s32 1, %s30
      %s40 = scalar_select %p37, %s39, %s30
      %p41 = scmp.ge.s32.totalorder %s40, 6
      %s42 = scalar_select %p41, 0, %s40
      %p43 = scmp.eq.s32.totalorder %s30, 0
      %s44 = scalar_select %p43, %s31, 0
      %p45 = scmp.eq.s32.totalorder %s42, 0
      %s46 = scalar_select %p45, %s38, 0
      %s47 = ssub.s32 %s44, %s46
      %p48 = scmp.eq.s32.totalorder %s47, 0
      %s50 = sadd.s32 %s49, 1
      %s51 = scalar_select %p48, %s49, %s50
      %p54 = pneg %p48
      %p55 = scmp.eq.s32.totalorder %s23, 5
      %p56 = por %p54, %p55
      %p57 = scmp.ne.s32.totalorder %s49, %s52
      %p58 = scmp.eq.s32.totalorder %s23, 0
      %p59 = por %p57, %p58
      %p60 = scmp.ne.s32.totalorder %s49, %s52
      %p61 = scmp.eq.s32.totalorder %s28, 5
      %p62 = por %p60, %p61
      %p63 = scmp.ne.s32.totalorder %s52, %s53
      %p64 = scmp.eq.s32.totalorder %s28, 0
      %p65 = por %p63, %p64
      %p66 = scmp.ne.s32.totalorder %s52, %s53
      %p67 = scmp.eq.s32.totalorder %s29, 5
      %p68 = por %p66, %p67
      %p70 = scmp.ne.s32.totalorder %s53, %s69
      %p71 = scmp.eq.s32.totalorder %s29, 0
      %p72 = por %p70, %p71
      %p73 = scmp.eq.s32.totalorder %s30, 0
      %p74 = scmp.le.s32.totalorder %s30, 4
      %s75 = scalar_select %p74, %s31, 0
      %s76 = scalar_select %p73, 0, %s75
      %p77 = scmp.eq.s32.totalorder %s42, 0
      %p78 = scmp.le.s32.totalorder %s42, 4
      %s79 = scalar_select %p78, %s38, 0
      %s80 = scalar_select %p77, 0, %s79
      %s81 = ssub.s32 %s76, %s80
      %p82 = scmp.eq.s32.totalorder %s81, 0
      %s84 = sadd.s32 %s83, 1
      %s85 = scalar_select %p82, %s83, %s84
      %p88 = pneg %p82
      %p89 = scmp.eq.s32.totalorder %s23, 5
      %p90 = por %p88, %p89
      %p91 = scmp.ne.s32.totalorder %s83, %s86
      %p92 = scmp.eq.s32.totalorder %s23, 0
      %p93 = por %p91, %p92
      %p94 = scmp.ne.s32.totalorder %s83, %s86
      %p95 = scmp.eq.s32.totalorder %s28, 5
      %p96 = por %p94, %p95
      %p97 = scmp.ne.s32.totalorder %s86, %s87
      %p98 = scmp.eq.s32.totalorder %s28, 0
      %p99 = por %p97, %p98
      %p100 = scmp.ne.s32.totalorder %s86, %s87
      %p101 = scmp.eq.s32.totalorder %s29, 5
      %p102 = por %p100, %p101
      %p104 = scmp.ne.s32.totalorder %s87, %s103
      %p105 = scmp.eq.s32.totalorder %s29, 0
      %p106 = por %p104, %p105
      %s108 = sadd.s32 %s107, 1
      %p111 = scmp.eq.s32.totalorder %s23, 5
      %p112 = scmp.ne.s32.totalorder %s107, %s109
      %p113 = scmp.eq.s32.totalorder %s23, 0
      %p114 = por %p112, %p113
      %p115 = scmp.ne.s32.totalorder %s107, %s109
      %p116 = scmp.eq.s32.totalorder %s28, 5
      %p117 = por %p115, %p116
      %p118 = scmp.ne.s32.totalorder %s109, %s110
      %p119 = scmp.eq.s32.totalorder %s28, 0
      %p120 = por %p118, %p119
      %p121 = scmp.ne.s32.totalorder %s109, %s110
      %p122 = scmp.eq.s32.totalorder %s29, 5
      %p123 = por %p121, %p122
      %p125 = scmp.ne.s32.totalorder %s110, %s124
      %p126 = scmp.eq.s32.totalorder %s29, 0
      %p127 = por %p125, %p126
      %s129 = sadd.s32 %s128, 1
      %p132 = scmp.eq.s32.totalorder %s23, 5
      %p133 = scmp.ne.s32.totalorder %s128, %s130
      %p134 = scmp.eq.s32.totalorder %s23, 0
      %p135 = por %p133, %p134
      %p136 = scmp.ne.s32.totalorder %s128, %s130
      %p137 = scmp.eq.s32.totalorder %s28, 5
      %p138 = por %p136, %p137
      %p139 = scmp.ne.s32.totalorder %s130, %s131
      %p140 = scmp.eq.s32.totalorder %s28, 0
      %p141 = por %p139, %p140
      %p142 = scmp.ne.s32.totalorder %s130, %s131
      %p143 = scmp.eq.s32.totalorder %s29, 5
      %p144 = por %p142, %p143
      %p146 = scmp.ne.s32.totalorder %s131, %s145
      %p147 = scmp.eq.s32.totalorder %s29, 0
      %p148 = por %p146, %p147
      %s149 = ssub.s32 %s30, 1
      %p150 = scmp.gt.s32.totalorder %s149, 0
      %s151 = scalar_select %p150, %s149, 0
      %p152 = scmp.lt.s32.totalorder %s151, 3
      %s153 = scalar_select %p152, %s151, 3
      %s154 = ssub.s32 %s42, 1
      %p155 = scmp.gt.s32.totalorder %s154, 0
      %s156 = scalar_select %p155, %s154, 0
      %p157 = scmp.lt.s32.totalorder %s156, 3
      %s158 = scalar_select %p157, %s156, 3
      %s159 = ssub.s32 %s153, %s158
      %p160 = scmp.eq.s32.totalorder %s159, 0
      %s162 = sadd.s32 %s161, 1
      %s163 = scalar_select %p160, %s161, %s162
      %p166 = pneg %p160
      %p167 = scmp.eq.s32.totalorder %s23, 5
      %p168 = por %p166, %p167
      %p169 = scmp.ne.s32.totalorder %s161, %s164
      %p170 = scmp.eq.s32.totalorder %s23, 0
      %p171 = por %p169, %p170
      %p172 = scmp.ne.s32.totalorder %s161, %s164
      %p173 = scmp.eq.s32.totalorder %s28, 5
      %p174 = por %p172, %p173
      %p175 = scmp.ne.s32.totalorder %s164, %s165
      %p176 = scmp.eq.s32.totalorder %s28, 0
      %p177 = por %p175, %p176
      %p178 = scmp.ne.s32.totalorder %s164, %s165
      %p179 = scmp.eq.s32.totalorder %s29, 5
      %p180 = por %p178, %p179
      %p182 = scmp.ne.s32.totalorder %s165, %s181
      %p183 = scmp.eq.s32.totalorder %s29, 0
      %p184 = por %p182, %p183
      %s186 = sadd.s32 %s185, 1
      %p189 = scmp.eq.s32.totalorder %s23, 5
      %p190 = scmp.ne.s32.totalorder %s185, %s187
      %p191 = scmp.eq.s32.totalorder %s23, 0
      %p192 = por %p190, %p191
      %p193 = scmp.ne.s32.totalorder %s185, %s187
      %p194 = scmp.eq.s32.totalorder %s28, 5
      %p195 = por %p193, %p194
      %p196 = scmp.ne.s32.totalorder %s187, %s188
      %p197 = scmp.eq.s32.totalorder %s28, 0
      %p198 = por %p196, %p197
      %p199 = scmp.ne.s32.totalorder %s187, %s188
      %p200 = scmp.eq.s32.totalorder %s29, 5
      %p201 = por %p199, %p200
      %p203 = scmp.ne.s32.totalorder %s188, %s202
      %p204 = scmp.eq.s32.totalorder %s29, 0
      %p205 = por %p203, %p204
      %s207 = sadd.s32 %s206, 1
      %p210 = scmp.eq.s32.totalorder %s23, 5
      %p211 = scmp.ne.s32.totalorder %s206, %s208
      %p212 = scmp.eq.s32.totalorder %s23, 0
      %p213 = por %p211, %p212
      %p214 = scmp.ne.s32.totalorder %s206, %s208
      %p215 = scmp.eq.s32.totalorder %s28, 5
      %p216 = por %p214, %p215
      %p217 = scmp.ne.s32.totalorder %s208, %s209
      %p218 = scmp.eq.s32.totalorder %s28, 0
      %p219 = por %p217, %p218
      %p220 = scmp.ne.s32.totalorder %s208, %s209
      %p221 = scmp.eq.s32.totalorder %s29, 5
      %p222 = por %p220, %p221
      %p224 = scmp.ne.s32.totalorder %s209, %s223
      %p225 = scmp.eq.s32.totalorder %s29, 0
      %p226 = por %p224, %p225
      %s228 = sadd.s32 %s227, 1
      %p231 = scmp.eq.s32.totalorder %s23, 5
      %p232 = scmp.ne.s32.totalorder %s227, %s229
      %p233 = scmp.eq.s32.totalorder %s23, 0
      %p234 = por %p232, %p233
      %p235 = scmp.ne.s32.totalorder %s227, %s229
      %p236 = scmp.eq.s32.totalorder %s28, 5
      %p237 = por %p235, %p236
      %p238 = scmp.ne.s32.totalorder %s229, %s230
      %p239 = scmp.eq.s32.totalorder %s28, 0
      %p240 = por %p238, %p239
      %p241 = scmp.ne.s32.totalorder %s229, %s230
      %p242 = scmp.eq.s32.totalorder %s29, 5
      %p243 = por %p241, %p242
      %p245 = scmp.ne.s32.totalorder %s230, %s244
      %p246 = scmp.eq.s32.totalorder %s29, 0
      %p247 = por %p245, %p246
      %p248 = scmp.le.s32.totalorder 1, %s23
      %p249 = scmp.lt.s32.totalorder %s23, 7
      %p250 = pnand %p248, %p249
      %p251 = pneg %p250
      // Predicated region
      $region9: #{tpu_custom_call.1} parent=5 // pred_check
        _
      $region10: #{tpu_custom_call.1} parent=5 // pred_check_branch
        %253 = sbr.rel (%p250) target = $region12
      $region11: #{tpu_custom_call.1} parent=5 // pred_region
        %s254 = ssub.s32 %s23, 1
        // Predicated region
        $region13: #{tpu_custom_call.1} parent=11 // pred_check
          %p255 = pneg %p120
        $region14: #{tpu_custom_call.1} parent=11 // pred_check_branch
          %257 = sbr.rel (%p255) target = $region16
        $region15: #{tpu_custom_call.1} parent=11 // pred_region
          %259 = vsyncadd [#allocation9], 0
          %s260 = sshll.u32 %s2, 4
          %s261 = int_to_ptr.hbm [resolvable:$true] %s260
          %s262 = sshll.u32 [#allocation10], 4
          %s263 = int_to_ptr.vmem [resolvable:$true] %s262
          %268 = dma.hbm_to_vmem [thread:$0]  %s261, 2048, %s263, [#allocation9], 128, 128, 8
        $region16: #{tpu_custom_call.1} parent=11 // pred_fallthru
          _
        // Predicated region
        $region17: #{tpu_custom_call.1} parent=11 // pred_check
          %p269 = pneg %p141
        $region18: #{tpu_custom_call.1} parent=11 // pred_check_branch
          %271 = sbr.rel (%p269) target = $region20
        $region19: #{tpu_custom_call.1} parent=11 // pred_region
          _
        $region20: #{tpu_custom_call.1} parent=11 // pred_fallthru
          _
        // Predicated region
        $region21: #{tpu_custom_call.1} parent=11 // pred_check
          %p272 = pneg %p198
        $region22: #{tpu_custom_call.1} parent=11 // pred_check_branch
          %274 = sbr.rel (%p272) target = $region24
        $region23: #{tpu_custom_call.1} parent=11 // pred_region
          %276 = vsyncadd [#allocation12], 0
          %s277 = sshll.u32 %s5, 4
          %s278 = int_to_ptr.hbm [resolvable:$true] %s277
          %s279 = sshll.u32 [#allocation13], 4
          %s280 = int_to_ptr.vmem [resolvable:$true] %s279
          %285 = dma.hbm_to_vmem [thread:$0]  %s278, 2048, %s280, [#allocation12], 128, 128, 8
        $region24: #{tpu_custom_call.1} parent=11 // pred_fallthru
          _
        // Predicated region
        $region25: #{tpu_custom_call.1} parent=11 // pred_check
          %p286 = pneg %p219
        $region26: #{tpu_custom_call.1} parent=11 // pred_check_branch
          %288 = sbr.rel (%p286) target = $region28
        $region27: #{tpu_custom_call.1} parent=11 // pred_region
          _
        $region28: #{tpu_custom_call.1} parent=11 // pred_fallthru
          _
      $region12: #{tpu_custom_call.1} parent=5 // pred_fallthru
        _
      %p289 = scmp.lt.s32.totalorder %s23, 6
      // Predicated region
      $region29: #{tpu_custom_call.1} parent=5 // pred_check
        %p290 = pneg %p289
      $region30: #{tpu_custom_call.1} parent=5 // pred_check_branch
        %292 = sbr.rel (%p290) target = $region32
      $region31: #{tpu_custom_call.1} parent=5 // pred_region
        // Predicated region
        $region33: #{tpu_custom_call.1} parent=31 // pred_check
          %p293 = pneg %p59
        $region34: #{tpu_custom_call.1} parent=31 // pred_check_branch
          %295 = sbr.rel (%p293) target = $region36
        $region35: #{tpu_custom_call.1} parent=31 // pred_region
          %s296 = sand.u32 %s49, 1
          %s297 = scalar_lea.sflag [#allocation6], %s296
          %s298 = sand.u32 %s49, 1
          %s299 = smul.addr %s298, 64
          %s300 = scalar_lea.vmem [#allocation5], %s299
          %p301 = scmp.eq.s32.totalorder %s30, 0
          %s302 = scalar_select %p301, %s31, 0
          %s303 = smul.u32 8, %s302
          %305 = vsyncadd %s297, 0
          %s306 = smul.addr %s303, 8
          %s307 = scalar_lea.hbm %s0, %s306
          %s308 = sshll.u32 %s307, 4
          %s309 = int_to_ptr.hbm [resolvable:$true] %s308
          %s310 = sshll.u32 %s300, 4
          %s311 = int_to_ptr.vmem [resolvable:$true] %s310
          %316 = dma.hbm_to_vmem [thread:$0]  %s309, 1024, %s311, %s297, 128, 128, 8
        $region36: #{tpu_custom_call.1} parent=31 // pred_fallthru
          _
        // Predicated region
        $region37: #{tpu_custom_call.1} parent=31 // pred_check
          %p317 = pneg %p93
        $region38: #{tpu_custom_call.1} parent=31 // pred_check_branch
          %319 = sbr.rel (%p317) target = $region40
        $region39: #{tpu_custom_call.1} parent=31 // pred_region
          %s320 = sand.u32 %s23, 1
          %s321 = scalar_lea.sflag [#allocation9], %s320
          %s322 = sand.u32 %s83, 1
          %s323 = smul.addr %s322, 64
          %s324 = scalar_lea.vmem [#allocation8], %s323
          %p325 = scmp.eq.s32.totalorder %s30, 0
          %p326 = scmp.le.s32.totalorder %s30, 4
          %s327 = scalar_select %p326, %s31, 0
          %s328 = scalar_select %p325, 0, %s327
          %s329 = smul.u32 8, %s328
          %331 = vsyncadd %s321, 0
          %s332 = smul.addr %s329, 8
          %s333 = scalar_lea.hbm %s1, %s332
          %s334 = sshll.u32 %s333, 4
          %s335 = int_to_ptr.hbm [resolvable:$true] %s334
          %s336 = sshll.u32 %s324, 4
          %s337 = int_to_ptr.vmem [resolvable:$true] %s336
          %342 = dma.hbm_to_vmem [thread:$0]  %s335, 1024, %s337, %s321, 128, 128, 8
        $region40: #{tpu_custom_call.1} parent=31 // pred_fallthru
          _
        // Predicated region
        $region41: #{tpu_custom_call.1} parent=31 // pred_check
          %p343 = pneg %p171
        $region42: #{tpu_custom_call.1} parent=31 // pred_check_branch
          %345 = sbr.rel (%p343) target = $region44
        $region43: #{tpu_custom_call.1} parent=31 // pred_region
          %s346 = sand.u32 %s23, 1
          %s347 = scalar_lea.sflag [#allocation12], %s346
          %s348 = sand.u32 %s161, 1
          %s349 = smul.addr %s348, 128
          %s350 = scalar_lea.vmem [#allocation11], %s349
          %s351 = ssub.s32 %s30, 1
          %p352 = scmp.gt.s32.totalorder %s351, 0
          %s353 = scalar_select %p352, %s351, 0
          %p354 = scmp.lt.s32.totalorder %s353, 3
          %s355 = scalar_select %p354, %s353, 3
          %357 = vsyncadd %s347, 0
          %s358 = smul.addr %s355, 16
          %s359 = smul.addr %s358, 8
          %s360 = scalar_lea.hbm %s4, %s359
          %s361 = sshll.u32 %s360, 4
          %s362 = int_to_ptr.hbm [resolvable:$true] %s361
          %s363 = sshll.u32 %s350, 4
          %s364 = int_to_ptr.vmem [resolvable:$true] %s363
          %369 = dma.hbm_to_vmem [thread:$0]  %s362, 2048, %s364, %s347, 128, 128, 8
        $region44: #{tpu_custom_call.1} parent=31 // pred_fallthru
          _
      $region32: #{tpu_custom_call.1} parent=5 // pred_fallthru
        _
      %p370 = scmp.le.s32.totalorder 1, %s23
      %p371 = scmp.lt.s32.totalorder %s23, 7
      %p372 = pnand %p370, %p371
      %p373 = pneg %p372
      // Predicated region
      $region45: #{tpu_custom_call.1} parent=5 // pred_check
        _
      $region46: #{tpu_custom_call.1} parent=5 // pred_check_branch
        %375 = sbr.rel (%p372) target = $region48
      $region47: #{tpu_custom_call.1} parent=5 // pred_region
        %s376 = ssub.s32 %s23, 1
        %s377 = sand.u32 %s52, 1
        %s378 = scalar_lea.sflag [#allocation6], %s377
        %s379 = sand.u32 %s52, 1
        %s380 = smul.addr %s379, 64
        %s381 = scalar_lea.vmem [#allocation5], %s380
        // Predicated region
        $region49: #{tpu_custom_call.1} parent=47 // pred_check
          %p382 = pneg %p65
        $region50: #{tpu_custom_call.1} parent=47 // pred_check_branch
          %384 = sbr.rel (%p382) target = $region52
        $region51: #{tpu_custom_call.1} parent=47 // pred_region
          %386 = dma.done %s378, 1024
        $region52: #{tpu_custom_call.1} parent=47 // pred_fallthru
          _
        %s387 = sand.u32 %s28, 1
        %s388 = scalar_lea.sflag [#allocation9], %s387
        %s389 = sand.u32 %s86, 1
        %s390 = smul.addr %s389, 64
        %s391 = scalar_lea.vmem [#allocation8], %s390
        // Predicated region
        $region53: #{tpu_custom_call.1} parent=47 // pred_check
          %p392 = pneg %p99
        $region54: #{tpu_custom_call.1} parent=47 // pred_check_branch
          %394 = sbr.rel (%p392) target = $region56
        $region55: #{tpu_custom_call.1} parent=47 // pred_region
          %396 = dma.done %s388, 1024
        $region56: #{tpu_custom_call.1} parent=47 // pred_fallthru
          _
        // Predicated region
        $region57: #{tpu_custom_call.1} parent=47 // pred_check
          %p397 = pneg %p120
        $region58: #{tpu_custom_call.1} parent=47 // pred_check_branch
          %399 = sbr.rel (%p397) target = $region60
        $region59: #{tpu_custom_call.1} parent=47 // pred_region
          %401 = dma.done [#allocation9], 2048
        $region60: #{tpu_custom_call.1} parent=47 // pred_fallthru
          _
        %s402 = sand.u32 %s28, 1
        %s403 = scalar_lea.sflag [#allocation12], %s402
        %s404 = sand.u32 %s164, 1
        %s405 = smul.addr %s404, 128
        %s406 = scalar_lea.vmem [#allocation11], %s405
        // Predicated region
        $region61: #{tpu_custom_call.1} parent=47 // pred_check
          %p407 = pneg %p177
        $region62: #{tpu_custom_call.1} parent=47 // pred_check_branch
          %409 = sbr.rel (%p407) target = $region64
        $region63: #{tpu_custom_call.1} parent=47 // pred_region
          %411 = dma.done %s403, 2048
        $region64: #{tpu_custom_call.1} parent=47 // pred_fallthru
          _
        // Predicated region
        $region65: #{tpu_custom_call.1} parent=47 // pred_check
          %p412 = pneg %p198
        $region66: #{tpu_custom_call.1} parent=47 // pred_check_branch
          %414 = sbr.rel (%p412) target = $region68
        $region67: #{tpu_custom_call.1} parent=47 // pred_region
          %416 = dma.done [#allocation12], 2048
        $region68: #{tpu_custom_call.1} parent=47 // pred_fallthru
          _
        %s417 = sand.u32 %s52, 1
        %s418 = scalar_lea.sflag [#allocation6], %s417
        %s419 = sand.u32 %s52, 1
        %s420 = smul.addr %s419, 64
        %s421 = scalar_lea.vmem [#allocation5], %s420
        %p422 = pneg %p65
        %p423 = pneg %p62
        %s424 = sand.u32 %s28, 1
        %s425 = scalar_lea.sflag [#allocation9], %s424
        %s426 = sand.u32 %s86, 1
        %s427 = smul.addr %s426, 64
        %s428 = scalar_lea.vmem [#allocation8], %s427
        %p429 = pneg %p99
        %p430 = pneg %p96
        %p431 = pneg %p120
        %p432 = pneg %p117
        %p433 = pneg %p141
        %p434 = pneg %p138
        %s435 = sand.u32 %s28, 1
        %s436 = scalar_lea.sflag [#allocation12], %s435
        %s437 = sand.u32 %s164, 1
        %s438 = smul.addr %s437, 128
        %s439 = scalar_lea.vmem [#allocation11], %s438
        %p440 = pneg %p177
        %p441 = pneg %p174
        %p442 = pneg %p198
        %p443 = pneg %p195
        %p444 = pneg %p219
        %p445 = pneg %p216
        %p446 = pneg %p240
        %p447 = pneg %p237
        %p448 = scmp.eq.s32.totalorder %s32, 0
        %s449 = scalar_select %p448, %s33, 0
        %s450 = smul.u32 8, %s449
        %p451 = scmp.eq.s32.totalorder %s32, 0
        %p452 = scmp.le.s32.totalorder %s32, 4
        %s453 = scalar_select %p452, %s33, 0
        %s454 = scalar_select %p451, 0, %s453
        %s455 = smul.u32 8, %s454
        %s456 = ssub.s32 %s32, 1
        %p457 = scmp.gt.s32.totalorder %s456, 0
        %s458 = scalar_select %p457, %s456, 0
        %p459 = scmp.lt.s32.totalorder %s458, 3
        %s460 = scalar_select %p459, %s458, 3
        %s461 = smul.u32 %s33, 64
        %p462 = scmp.eq.s32.totalorder %s32, 0
        // Predicated region
        $region69: #{tpu_custom_call.1} parent=47 // pred_check
          %p463 = pneg %p462
        $region70: #{tpu_custom_call.1} parent=47 // pred_check_branch
          %465 = sbr.rel (%p463) target = $region72
        $region71: #{tpu_custom_call.1} parent=47 // pred_region
          %v466 = vld [vmem:[%s381] sm:$0xff]
          %v467 = vld [vmem:[%s381 + $0x8] sm:$0xff]
          %v468 = vld [vmem:[%s381 + $0x10] sm:$0xff]
          %v469 = vld [vmem:[%s381 + $0x18] sm:$0xff]
          %v470 = vld [vmem:[%s381 + $0x20] sm:$0xff]
          %v471 = vld [vmem:[%s381 + $0x28] sm:$0xff]
          %v472 = vld [vmem:[%s381 + $0x30] sm:$0xff]
          %v473 = vld [vmem:[%s381 + $0x38] sm:$0xff]
          %v474 = vld [vmem:[#allocation10] sm:$0xff]
          %v475 = vld [vmem:[#allocation10 + $0x8] sm:$0xff]
          %v476 = vld [vmem:[#allocation10 + $0x10] sm:$0xff]
          %v477 = vld [vmem:[#allocation10 + $0x18] sm:$0xff]
          %v478 = vld [vmem:[#allocation10 + $0x20] sm:$0xff]
          %v479 = vld [vmem:[#allocation10 + $0x28] sm:$0xff]
          %v480 = vld [vmem:[#allocation10 + $0x30] sm:$0xff]
          %v481 = vld [vmem:[#allocation10 + $0x38] sm:$0xff]
          %v482 = vld [vmem:[#allocation10 + $0x40] sm:$0xff]
          %v483 = vld [vmem:[#allocation10 + $0x48] sm:$0xff]
          %v484 = vld [vmem:[#allocation10 + $0x50] sm:$0xff]
          %v485 = vld [vmem:[#allocation10 + $0x58] sm:$0xff]
          %v486 = vld [vmem:[#allocation10 + $0x60] sm:$0xff]
          %v487 = vld [vmem:[#allocation10 + $0x68] sm:$0xff]
          %v488 = vld [vmem:[#allocation10 + $0x70] sm:$0xff]
          %v489 = vld [vmem:[#allocation10 + $0x78] sm:$0xff]
          %v490 = vld [vmem:[%s3] sm:$0x1]
          %v492 = vperm.slane %v490, 0
          %494 = vmatpush.msra.mxu0 %v489
          %495 = vmatpush.msra.mxu0 %v488
          %496 = vmatpush.msra.mxu0 %v487
          %497 = vmatpush.msra.mxu0 %v486
          %498 = vmatpush.msra.mxu0 %v485
          %499 = vmatpush.msra.mxu0 %v484
          %500 = vmatpush.msra.mxu0 %v483
          %501 = vmatpush.msra.mxu0 %v482
          %502 = vmatpush.msra.mxu0 %v481
          %503 = vmatpush.msra.mxu0 %v480
          %504 = vmatpush.msra.mxu0 %v479
          %505 = vmatpush.msra.mxu0 %v478
          %506 = vmatpush.msra.mxu0 %v477
          %507 = vmatpush.msra.mxu0 %v476
          %508 = vmatpush.msra.mxu0 %v475
          %509 = vmatpush.msra.mxu0 %v474
          %510 = vmatmul.f32.gmra.mxu0 %v466
          %v511 = vpop.f32.mrf.mxu0
          %v512 = vadd.f32 %v492, %v511
          %513 = vmatmul.f32.gmra.mxu0 %v467
          %v514 = vpop.f32.mrf.mxu0
          %v515 = vadd.f32 %v492, %v514
          %516 = vmatmul.f32.gmra.mxu0 %v468
          %v517 = vpop.f32.mrf.mxu0
          %v518 = vadd.f32 %v492, %v517
          %519 = vmatmul.f32.gmra.mxu0 %v469
          %v520 = vpop.f32.mrf.mxu0
          %v521 = vadd.f32 %v492, %v520
          %522 = vmatmul.f32.gmra.mxu0 %v470
          %v523 = vpop.f32.mrf.mxu0
          %v524 = vadd.f32 %v492, %v523
          %525 = vmatmul.f32.gmra.mxu0 %v471
          %v526 = vpop.f32.mrf.mxu0
          %v527 = vadd.f32 %v492, %v526
          %528 = vmatmul.f32.gmra.mxu0 %v472
          %v529 = vpop.f32.mrf.mxu0
          %v530 = vadd.f32 %v492, %v529
          %531 = vmatmul.f32.gmra.mxu0 %v473
          %v532 = vpop.f32.mrf.mxu0
          %v533 = vadd.f32 %v492, %v532
          %534 = vdwg.mxu0
          %v535 = vmax.f32 %v512, 0.0
          %v536 = vmax.f32 %v515, 0.0
          %v537 = vmax.f32 %v518, 0.0
          %v538 = vmax.f32 %v521, 0.0
          %v539 = vmax.f32 %v524, 0.0
          %v540 = vmax.f32 %v527, 0.0
          %v541 = vmax.f32 %v530, 0.0
          %v542 = vmax.f32 %v533, 0.0
          %s543 = scalar_lea.vmem [#allocation2], %s461
          %544 = vst [vmem:[%s543] sm:$0xff] %v535
          %545 = vst [vmem:[%s543 + $0x8] sm:$0xff] %v536
          %546 = vst [vmem:[%s543 + $0x10] sm:$0xff] %v537
          %547 = vst [vmem:[%s543 + $0x18] sm:$0xff] %v538
          %548 = vst [vmem:[%s543 + $0x20] sm:$0xff] %v539
          %549 = vst [vmem:[%s543 + $0x28] sm:$0xff] %v540
          %550 = vst [vmem:[%s543 + $0x30] sm:$0xff] %v541
          %551 = vst [vmem:[%s543 + $0x38] sm:$0xff] %v542
          %v552 = vmul.f32 %v535, 0.1
          %v553 = vmul.f32 %v536, 0.1
          %v554 = vmul.f32 %v537, 0.1
          %v555 = vmul.f32 %v538, 0.1
          %v556 = vmul.f32 %v539, 0.1
          %v557 = vmul.f32 %v540, 0.1
          %v558 = vmul.f32 %v541, 0.1
          %v559 = vmul.f32 %v542, 0.1
          %s560 = scalar_lea.vmem [#allocation4], %s461
          %561 = vst [vmem:[%s560] sm:$0xff] %v552
          %562 = vst [vmem:[%s560 + $0x8] sm:$0xff] %v553
          %563 = vst [vmem:[%s560 + $0x10] sm:$0xff] %v554
          %564 = vst [vmem:[%s560 + $0x18] sm:$0xff] %v555
          %565 = vst [vmem:[%s560 + $0x20] sm:$0xff] %v556
          %566 = vst [vmem:[%s560 + $0x28] sm:$0xff] %v557
          %567 = vst [vmem:[%s560 + $0x30] sm:$0xff] %v558
          %568 = vst [vmem:[%s560 + $0x38] sm:$0xff] %v559
        $region72: #{tpu_custom_call.1} parent=47 // pred_fallthru
          _
        %p569 = scmp.ge.s32.totalorder %s32, 1
        %p570 = scmp.le.s32.totalorder %s32, 4
        %p571 = pnand %p569, %p570
        %p572 = pneg %p571
        %p573 = scmp.lt.s32.totalorder %s32, 0
        %s574 = ssub.s32 0, %s32
        %s575 = scalar_select %p573, %s574, %s32
        %s576 = sand.u32 %s575, 1
        %s577 = ssub.s32 0, %s576
        %s578 = scalar_select %p573, %s577, %s576
        %p579 = scmp.ne.s32.totalorder %s578, 0
        %p580 = scmp.lt.s32.totalorder %s578, 0
        %p581 = pnand %p580, %p579
        %p582 = pneg %p581
        %s583 = sadd.s32 %s578, 2
        %s584 = scalar_select %p582, %s583, %s578
        %p585 = scmp.eq.s32.totalorder %s584, 1
        %p586 = pnand %p572, %p585
        %p587 = pneg %p586
        // Predicated region
        $region73: #{tpu_custom_call.1} parent=47 // pred_check
          _
        $region74: #{tpu_custom_call.1} parent=47 // pred_check_branch
          %589 = sbr.rel (%p586) target = $region76
        $region75: #{tpu_custom_call.1} parent=47 // pred_region
          %v590 = vld [vmem:[%s391] sm:$0xff]
          %v591 = vld [vmem:[%s391 + $0x8] sm:$0xff]
          %v592 = vld [vmem:[%s391 + $0x10] sm:$0xff]
          %v593 = vld [vmem:[%s391 + $0x18] sm:$0xff]
          %v594 = vld [vmem:[%s391 + $0x20] sm:$0xff]
          %v595 = vld [vmem:[%s391 + $0x28] sm:$0xff]
          %v596 = vld [vmem:[%s391 + $0x30] sm:$0xff]
          %v597 = vld [vmem:[%s391 + $0x38] sm:$0xff]
          %v598 = vld [vmem:[#allocation2] sm:$0xff]
          %v599 = vld [vmem:[#allocation2 + $0x8] sm:$0xff]
          %v600 = vld [vmem:[#allocation2 + $0x10] sm:$0xff]
          %v601 = vld [vmem:[#allocation2 + $0x18] sm:$0xff]
          %v602 = vld [vmem:[#allocation2 + $0x20] sm:$0xff]
          %v603 = vld [vmem:[#allocation2 + $0x28] sm:$0xff]
          %v604 = vld [vmem:[#allocation2 + $0x30] sm:$0xff]
          %v605 = vld [vmem:[#allocation2 + $0x38] sm:$0xff]
          %vm606 = vcmask 523264
          %v608 = vsel %vm606, %v590, 0
          %v611 = vsel %vm606, %v591, 0
          %v614 = vsel %vm606, %v592, 0
          %v617 = vsel %vm606, %v593, 0
          %v620 = vsel %vm606, %v594, 0
          %v623 = vsel %vm606, %v595, 0
          %v626 = vsel %vm606, %v596, 0
          %v629 = vsel %vm606, %v597, 0
          %631 = vmatpush.msra.mxu0 0.0
          %632 = vmatpush.msra.mxu0 0.0
          %633 = vmatpush.msra.mxu0 0.0
          %634 = vmatpush.msra.mxu0 0.0
          %635 = vmatpush.msra.mxu0 0.0
          %636 = vmatpush.msra.mxu0 0.0
          %637 = vmatpush.msra.mxu0 0.0
          %638 = vmatpush.msra.mxu0 0.0
          %639 = vmatpush.msra.mxu0 %v605
          %640 = vmatpush.msra.mxu0 %v604
          %641 = vmatpush.msra.mxu0 %v603
          %642 = vmatpush.msra.mxu0 %v602
          %643 = vmatpush.msra.mxu0 %v601
          %644 = vmatpush.msra.mxu0 %v600
          %645 = vmatpush.msra.mxu0 %v599
          %646 = vmatpush.msra.mxu0 %v598
          %647 = vmatmul.f32.gmra.mxu0 %v608
          %v648 = vpop.f32.mrf.mxu0
          %v649 = vadd.f32 0.0, %v648
          %650 = vmatmul.f32.gmra.mxu0 %v611
          %v651 = vpop.f32.mrf.mxu0
          %v652 = vadd.f32 0.0, %v651
          %653 = vmatmul.f32.gmra.mxu0 %v614
          %v654 = vpop.f32.mrf.mxu0
          %v655 = vadd.f32 0.0, %v654
          %656 = vmatmul.f32.gmra.mxu0 %v617
          %v657 = vpop.f32.mrf.mxu0
          %v658 = vadd.f32 0.0, %v657
          %659 = vmatmul.f32.gmra.mxu0 %v620
          %v660 = vpop.f32.mrf.mxu0
          %v661 = vadd.f32 0.0, %v660
          %662 = vmatmul.f32.gmra.mxu0 %v623
          %v663 = vpop.f32.mrf.mxu0
          %v664 = vadd.f32 0.0, %v663
          %665 = vmatmul.f32.gmra.mxu0 %v626
          %v666 = vpop.f32.mrf.mxu0
          %v667 = vadd.f32 0.0, %v666
          %668 = vmatmul.f32.gmra.mxu0 %v629
          %v669 = vpop.f32.mrf.mxu0
          %v670 = vadd.f32 0.0, %v669
          %671 = vdwg.mxu0
          %v672 = vmul.f32 %v649, 0.9
          %v673 = vmul.f32 %v652, 0.9
          %v674 = vmul.f32 %v655, 0.9
          %v675 = vmul.f32 %v658, 0.9
          %v676 = vmul.f32 %v661, 0.9
          %v677 = vmul.f32 %v664, 0.9
          %v678 = vmul.f32 %v667, 0.9
          %v679 = vmul.f32 %v670, 0.9
          %s680 = scalar_lea.vmem [#allocation4], %s461
          %v681 = vld [vmem:[%s680] sm:$0xff]
          %v682 = vld [vmem:[%s680 + $0x8] sm:$0xff]
          %v683 = vld [vmem:[%s680 + $0x10] sm:$0xff]
          %v684 = vld [vmem:[%s680 + $0x18] sm:$0xff]
          %v685 = vld [vmem:[%s680 + $0x20] sm:$0xff]
          %v686 = vld [vmem:[%s680 + $0x28] sm:$0xff]
          %v687 = vld [vmem:[%s680 + $0x30] sm:$0xff]
          %v688 = vld [vmem:[%s680 + $0x38] sm:$0xff]
          %v689 = vadd.f32 %v672, %v681
          %v690 = vadd.f32 %v673, %v682
          %v691 = vadd.f32 %v674, %v683
          %v692 = vadd.f32 %v675, %v684
          %v693 = vadd.f32 %v676, %v685
          %v694 = vadd.f32 %v677, %v686
          %v695 = vadd.f32 %v678, %v687
          %v696 = vadd.f32 %v679, %v688
          %v697 = vld [vmem:[%s406] sm:$0xff]
          %v698 = vld [vmem:[%s406 + $0x8] sm:$0xff]
          %v699 = vld [vmem:[%s406 + $0x10] sm:$0xff]
          %v700 = vld [vmem:[%s406 + $0x18] sm:$0xff]
          %v701 = vld [vmem:[%s406 + $0x20] sm:$0xff]
          %v702 = vld [vmem:[%s406 + $0x28] sm:$0xff]
          %v703 = vld [vmem:[%s406 + $0x30] sm:$0xff]
          %v704 = vld [vmem:[%s406 + $0x38] sm:$0xff]
          %v705 = vld [vmem:[%s406 + $0x40] sm:$0xff]
          %v706 = vld [vmem:[%s406 + $0x48] sm:$0xff]
          %v707 = vld [vmem:[%s406 + $0x50] sm:$0xff]
          %v708 = vld [vmem:[%s406 + $0x58] sm:$0xff]
          %v709 = vld [vmem:[%s406 + $0x60] sm:$0xff]
          %v710 = vld [vmem:[%s406 + $0x68] sm:$0xff]
          %v711 = vld [vmem:[%s406 + $0x70] sm:$0xff]
          %v712 = vld [vmem:[%s406 + $0x78] sm:$0xff]
          %713 = vmatpush.msra.mxu0 %v712
          %714 = vmatpush.msra.mxu0 %v711
          %715 = vmatpush.msra.mxu0 %v710
          %716 = vmatpush.msra.mxu0 %v709
          %717 = vmatpush.msra.mxu0 %v708
          %718 = vmatpush.msra.mxu0 %v707
          %719 = vmatpush.msra.mxu0 %v706
          %720 = vmatpush.msra.mxu0 %v705
          %721 = vmatpush.msra.mxu0 %v704
          %722 = vmatpush.msra.mxu0 %v703
          %723 = vmatpush.msra.mxu0 %v702
          %724 = vmatpush.msra.mxu0 %v701
          %725 = vmatpush.msra.mxu0 %v700
          %726 = vmatpush.msra.mxu0 %v699
          %727 = vmatpush.msra.mxu0 %v698
          %728 = vmatpush.msra.mxu0 %v697
          %729 = vmatmul.f32.gmra.mxu0 %v689
          %v730 = vpop.f32.mrf.mxu0
          %v731 = vadd.f32 0.0, %v730
          %732 = vmatmul.f32.gmra.mxu0 %v690
          %v733 = vpop.f32.mrf.mxu0
          %v734 = vadd.f32 0.0, %v733
          %735 = vmatmul.f32.gmra.mxu0 %v691
          %v736 = vpop.f32.mrf.mxu0
          %v737 = vadd.f32 0.0, %v736
          %738 = vmatmul.f32.gmra.mxu0 %v692
          %v739 = vpop.f32.mrf.mxu0
          %v740 = vadd.f32 0.0, %v739
          %741 = vmatmul.f32.gmra.mxu0 %v693
          %v742 = vpop.f32.mrf.mxu0
          %v743 = vadd.f32 0.0, %v742
          %744 = vmatmul.f32.gmra.mxu0 %v694
          %v745 = vpop.f32.mrf.mxu0
          %v746 = vadd.f32 0.0, %v745
          %747 = vmatmul.f32.gmra.mxu0 %v695
          %v748 = vpop.f32.mrf.mxu0
          %v749 = vadd.f32 0.0, %v748
          %750 = vmatmul.f32.gmra.mxu0 %v696
          %v751 = vpop.f32.mrf.mxu0
          %v752 = vadd.f32 0.0, %v751
          %753 = vdwg.mxu0
          %v754 = vmax.f32 %v731, 0.0
          %v755 = vmax.f32 %v734, 0.0
          %v756 = vmax.f32 %v737, 0.0
          %v757 = vmax.f32 %v740, 0.0
          %v758 = vmax.f32 %v743, 0.0
          %v759 = vmax.f32 %v746, 0.0
          %v760 = vmax.f32 %v749, 0.0
          %v761 = vmax.f32 %v752, 0.0
          %s762 = scalar_lea.vmem [#allocation3], %s461
          %763 = vst [vmem:[%s762] sm:$0xff] %v754
          %764 = vst [vmem:[%s762 + $0x8] sm:$0xff] %v755
          %765 = vst [vmem:[%s762 + $0x10] sm:$0xff] %v756
          %766 = vst [vmem:[%s762 + $0x18] sm:$0xff] %v757
          %767 = vst [vmem:[%s762 + $0x20] sm:$0xff] %v758
          %768 = vst [vmem:[%s762 + $0x28] sm:$0xff] %v759
          %769 = vst [vmem:[%s762 + $0x30] sm:$0xff] %v760
          %770 = vst [vmem:[%s762 + $0x38] sm:$0xff] %v761
        $region76: #{tpu_custom_call.1} parent=47 // pred_fallthru
          _
        %p771 = scmp.eq.s32.totalorder %s584, 0
        %p772 = pnand %p572, %p771
        %p773 = pneg %p772
        // Predicated region
        $region77: #{tpu_custom_call.1} parent=47 // pred_check
          _
        $region78: #{tpu_custom_call.1} parent=47 // pred_check_branch
          %775 = sbr.rel (%p772) target = $region80
        $region79: #{tpu_custom_call.1} parent=47 // pred_region
          %v776 = vld [vmem:[%s391] sm:$0xff]
          %v777 = vld [vmem:[%s391 + $0x8] sm:$0xff]
          %v778 = vld [vmem:[%s391 + $0x10] sm:$0xff]
          %v779 = vld [vmem:[%s391 + $0x18] sm:$0xff]
          %v780 = vld [vmem:[%s391 + $0x20] sm:$0xff]
          %v781 = vld [vmem:[%s391 + $0x28] sm:$0xff]
          %v782 = vld [vmem:[%s391 + $0x30] sm:$0xff]
          %v783 = vld [vmem:[%s391 + $0x38] sm:$0xff]
          %v784 = vld [vmem:[#allocation3] sm:$0xff]
          %v785 = vld [vmem:[#allocation3 + $0x8] sm:$0xff]
          %v786 = vld [vmem:[#allocation3 + $0x10] sm:$0xff]
          %v787 = vld [vmem:[#allocation3 + $0x18] sm:$0xff]
          %v788 = vld [vmem:[#allocation3 + $0x20] sm:$0xff]
          %v789 = vld [vmem:[#allocation3 + $0x28] sm:$0xff]
          %v790 = vld [vmem:[#allocation3 + $0x30] sm:$0xff]
          %v791 = vld [vmem:[#allocation3 + $0x38] sm:$0xff]
          %vm792 = vcmask 523264
          %v794 = vsel %vm792, %v776, 0
          %v797 = vsel %vm792, %v777, 0
          %v800 = vsel %vm792, %v778, 0
          %v803 = vsel %vm792, %v779, 0
          %v806 = vsel %vm792, %v780, 0
          %v809 = vsel %vm792, %v781, 0
          %v812 = vsel %vm792, %v782, 0
          %v815 = vsel %vm792, %v783, 0
          %817 = vmatpush.msra.mxu0 0.0
          %818 = vmatpush.msra.mxu0 0.0
          %819 = vmatpush.msra.mxu0 0.0
          %820 = vmatpush.msra.mxu0 0.0
          %821 = vmatpush.msra.mxu0 0.0
          %822 = vmatpush.msra.mxu0 0.0
          %823 = vmatpush.msra.mxu0 0.0
          %824 = vmatpush.msra.mxu0 0.0
          %825 = vmatpush.msra.mxu0 %v791
          %826 = vmatpush.msra.mxu0 %v790
          %827 = vmatpush.msra.mxu0 %v789
          %828 = vmatpush.msra.mxu0 %v788
          %829 = vmatpush.msra.mxu0 %v787
          %830 = vmatpush.msra.mxu0 %v786
          %831 = vmatpush.msra.mxu0 %v785
          %832 = vmatpush.msra.mxu0 %v784
          %833 = vmatmul.f32.gmra.mxu0 %v794
          %v834 = vpop.f32.mrf.mxu0
          %v835 = vadd.f32 0.0, %v834
          %836 = vmatmul.f32.gmra.mxu0 %v797
          %v837 = vpop.f32.mrf.mxu0
          %v838 = vadd.f32 0.0, %v837
          %839 = vmatmul.f32.gmra.mxu0 %v800
          %v840 = vpop.f32.mrf.mxu0
          %v841 = vadd.f32 0.0, %v840
          %842 = vmatmul.f32.gmra.mxu0 %v803
          %v843 = vpop.f32.mrf.mxu0
          %v844 = vadd.f32 0.0, %v843
          %845 = vmatmul.f32.gmra.mxu0 %v806
          %v846 = vpop.f32.mrf.mxu0
          %v847 = vadd.f32 0.0, %v846
          %848 = vmatmul.f32.gmra.mxu0 %v809
          %v849 = vpop.f32.mrf.mxu0
          %v850 = vadd.f32 0.0, %v849
          %851 = vmatmul.f32.gmra.mxu0 %v812
          %v852 = vpop.f32.mrf.mxu0
          %v853 = vadd.f32 0.0, %v852
          %854 = vmatmul.f32.gmra.mxu0 %v815
          %v855 = vpop.f32.mrf.mxu0
          %v856 = vadd.f32 0.0, %v855
          %857 = vdwg.mxu0
          %v858 = vmul.f32 %v835, 0.9
          %v859 = vmul.f32 %v838, 0.9
          %v860 = vmul.f32 %v841, 0.9
          %v861 = vmul.f32 %v844, 0.9
          %v862 = vmul.f32 %v847, 0.9
          %v863 = vmul.f32 %v850, 0.9
          %v864 = vmul.f32 %v853, 0.9
          %v865 = vmul.f32 %v856, 0.9
          %s866 = scalar_lea.vmem [#allocation4], %s461
          %v867 = vld [vmem:[%s866] sm:$0xff]
          %v868 = vld [vmem:[%s866 + $0x8] sm:$0xff]
          %v869 = vld [vmem:[%s866 + $0x10] sm:$0xff]
          %v870 = vld [vmem:[%s866 + $0x18] sm:$0xff]
          %v871 = vld [vmem:[%s866 + $0x20] sm:$0xff]
          %v872 = vld [vmem:[%s866 + $0x28] sm:$0xff]
          %v873 = vld [vmem:[%s866 + $0x30] sm:$0xff]
          %v874 = vld [vmem:[%s866 + $0x38] sm:$0xff]
          %v875 = vadd.f32 %v858, %v867
          %v876 = vadd.f32 %v859, %v868
          %v877 = vadd.f32 %v860, %v869
          %v878 = vadd.f32 %v861, %v870
          %v879 = vadd.f32 %v862, %v871
          %v880 = vadd.f32 %v863, %v872
          %v881 = vadd.f32 %v864, %v873
          %v882 = vadd.f32 %v865, %v874
          %v883 = vld [vmem:[%s406] sm:$0xff]
          %v884 = vld [vmem:[%s406 + $0x8] sm:$0xff]
          %v885 = vld [vmem:[%s406 + $0x10] sm:$0xff]
          %v886 = vld [vmem:[%s406 + $0x18] sm:$0xff]
          %v887 = vld [vmem:[%s406 + $0x20] sm:$0xff]
          %v888 = vld [vmem:[%s406 + $0x28] sm:$0xff]
          %v889 = vld [vmem:[%s406 + $0x30] sm:$0xff]
          %v890 = vld [vmem:[%s406 + $0x38] sm:$0xff]
          %v891 = vld [vmem:[%s406 + $0x40] sm:$0xff]
          %v892 = vld [vmem:[%s406 + $0x48] sm:$0xff]
          %v893 = vld [vmem:[%s406 + $0x50] sm:$0xff]
          %v894 = vld [vmem:[%s406 + $0x58] sm:$0xff]
          %v895 = vld [vmem:[%s406 + $0x60] sm:$0xff]
          %v896 = vld [vmem:[%s406 + $0x68] sm:$0xff]
          %v897 = vld [vmem:[%s406 + $0x70] sm:$0xff]
          %v898 = vld [vmem:[%s406 + $0x78] sm:$0xff]
          %899 = vmatpush.msra.mxu0 %v898
          %900 = vmatpush.msra.mxu0 %v897
          %901 = vmatpush.msra.mxu0 %v896
          %902 = vmatpush.msra.mxu0 %v895
          %903 = vmatpush.msra.mxu0 %v894
          %904 = vmatpush.msra.mxu0 %v893
          %905 = vmatpush.msra.mxu0 %v892
          %906 = vmatpush.msra.mxu0 %v891
          %907 = vmatpush.msra.mxu0 %v890
          %908 = vmatpush.msra.mxu0 %v889
          %909 = vmatpush.msra.mxu0 %v888
          %910 = vmatpush.msra.mxu0 %v887
          %911 = vmatpush.msra.mxu0 %v886
          %912 = vmatpush.msra.mxu0 %v885
          %913 = vmatpush.msra.mxu0 %v884
          %914 = vmatpush.msra.mxu0 %v883
          %915 = vmatmul.f32.gmra.mxu0 %v875
          %v916 = vpop.f32.mrf.mxu0
          %v917 = vadd.f32 0.0, %v916
          %918 = vmatmul.f32.gmra.mxu0 %v876
          %v919 = vpop.f32.mrf.mxu0
          %v920 = vadd.f32 0.0, %v919
          %921 = vmatmul.f32.gmra.mxu0 %v877
          %v922 = vpop.f32.mrf.mxu0
          %v923 = vadd.f32 0.0, %v922
          %924 = vmatmul.f32.gmra.mxu0 %v878
          %v925 = vpop.f32.mrf.mxu0
          %v926 = vadd.f32 0.0, %v925
          %927 = vmatmul.f32.gmra.mxu0 %v879
          %v928 = vpop.f32.mrf.mxu0
          %v929 = vadd.f32 0.0, %v928
          %930 = vmatmul.f32.gmra.mxu0 %v880
          %v931 = vpop.f32.mrf.mxu0
          %v932 = vadd.f32 0.0, %v931
          %933 = vmatmul.f32.gmra.mxu0 %v881
          %v934 = vpop.f32.mrf.mxu0
          %v935 = vadd.f32 0.0, %v934
          %936 = vmatmul.f32.gmra.mxu0 %v882
          %v937 = vpop.f32.mrf.mxu0
          %v938 = vadd.f32 0.0, %v937
          %939 = vdwg.mxu0
          %v940 = vmax.f32 %v917, 0.0
          %v941 = vmax.f32 %v920, 0.0
          %v942 = vmax.f32 %v923, 0.0
          %v943 = vmax.f32 %v926, 0.0
          %v944 = vmax.f32 %v929, 0.0
          %v945 = vmax.f32 %v932, 0.0
          %v946 = vmax.f32 %v935, 0.0
          %v947 = vmax.f32 %v938, 0.0
          %s948 = scalar_lea.vmem [#allocation2], %s461
          %949 = vst [vmem:[%s948] sm:$0xff] %v940
          %950 = vst [vmem:[%s948 + $0x8] sm:$0xff] %v941
          %951 = vst [vmem:[%s948 + $0x10] sm:$0xff] %v942
          %952 = vst [vmem:[%s948 + $0x18] sm:$0xff] %v943
          %953 = vst [vmem:[%s948 + $0x20] sm:$0xff] %v944
          %954 = vst [vmem:[%s948 + $0x28] sm:$0xff] %v945
          %955 = vst [vmem:[%s948 + $0x30] sm:$0xff] %v946
          %956 = vst [vmem:[%s948 + $0x38] sm:$0xff] %v947
        $region80: #{tpu_custom_call.1} parent=47 // pred_fallthru
          _
        %p957 = scmp.eq.s32.totalorder %s32, 5
        // Predicated region
        $region81: #{tpu_custom_call.1} parent=47 // pred_check
          %p958 = pneg %p957
        $region82: #{tpu_custom_call.1} parent=47 // pred_check_branch
          %960 = sbr.rel (%p958) target = $region84
        $region83: #{tpu_custom_call.1} parent=47 // pred_region
          %s961 = scalar_lea.vmem [#allocation2], %s461
          %v962 = vld [vmem:[%s961] sm:$0xff]
          %v963 = vld [vmem:[%s961 + $0x8] sm:$0xff]
          %v964 = vld [vmem:[%s961 + $0x10] sm:$0xff]
          %v965 = vld [vmem:[%s961 + $0x18] sm:$0xff]
          %v966 = vld [vmem:[%s961 + $0x20] sm:$0xff]
          %v967 = vld [vmem:[%s961 + $0x28] sm:$0xff]
          %v968 = vld [vmem:[%s961 + $0x30] sm:$0xff]
          %v969 = vld [vmem:[%s961 + $0x38] sm:$0xff]
          %v970 = vld [vmem:[#allocation13] sm:$0xff]
          %v971 = vld [vmem:[#allocation13 + $0x8] sm:$0xff]
          %v972 = vld [vmem:[#allocation13 + $0x10] sm:$0xff]
          %v973 = vld [vmem:[#allocation13 + $0x18] sm:$0xff]
          %v974 = vld [vmem:[#allocation13 + $0x20] sm:$0xff]
          %v975 = vld [vmem:[#allocation13 + $0x28] sm:$0xff]
          %v976 = vld [vmem:[#allocation13 + $0x30] sm:$0xff]
          %v977 = vld [vmem:[#allocation13 + $0x38] sm:$0xff]
          %v978 = vld [vmem:[#allocation13 + $0x40] sm:$0xff]
          %v979 = vld [vmem:[#allocation13 + $0x48] sm:$0xff]
          %v980 = vld [vmem:[#allocation13 + $0x50] sm:$0xff]
          %v981 = vld [vmem:[#allocation13 + $0x58] sm:$0xff]
          %v982 = vld [vmem:[#allocation13 + $0x60] sm:$0xff]
          %v983 = vld [vmem:[#allocation13 + $0x68] sm:$0xff]
          %v984 = vld [vmem:[#allocation13 + $0x70] sm:$0xff]
          %v985 = vld [vmem:[#allocation13 + $0x78] sm:$0xff]
          %v986 = vld [vmem:[%s6] sm:$0x1]
          %v988 = vperm.slane %v986, 0
          %990 = vmatpush.msra.mxu0 %v985
          %991 = vmatpush.msra.mxu0 %v984
          %992 = vmatpush.msra.mxu0 %v983
          %993 = vmatpush.msra.mxu0 %v982
          %994 = vmatpush.msra.mxu0 %v981
          %995 = vmatpush.msra.mxu0 %v980
          %996 = vmatpush.msra.mxu0 %v979
          %997 = vmatpush.msra.mxu0 %v978
          %998 = vmatpush.msra.mxu0 %v977
          %999 = vmatpush.msra.mxu0 %v976
          %1000 = vmatpush.msra.mxu0 %v975
          %1001 = vmatpush.msra.mxu0 %v974
          %1002 = vmatpush.msra.mxu0 %v973
          %1003 = vmatpush.msra.mxu0 %v972
          %1004 = vmatpush.msra.mxu0 %v971
          %1005 = vmatpush.msra.mxu0 %v970
          %1006 = vmatmul.f32.gmra.mxu0 %v962
          %v1007 = vpop.f32.mrf.mxu0
          %v1008 = vadd.f32 %v988, %v1007
          %1009 = vmatmul.f32.gmra.mxu0 %v963
          %v1010 = vpop.f32.mrf.mxu0
          %v1011 = vadd.f32 %v988, %v1010
          %1012 = vmatmul.f32.gmra.mxu0 %v964
          %v1013 = vpop.f32.mrf.mxu0
          %v1014 = vadd.f32 %v988, %v1013
          %1015 = vmatmul.f32.gmra.mxu0 %v965
          %v1016 = vpop.f32.mrf.mxu0
          %v1017 = vadd.f32 %v988, %v1016
          %1018 = vmatmul.f32.gmra.mxu0 %v966
          %v1019 = vpop.f32.mrf.mxu0
          %v1020 = vadd.f32 %v988, %v1019
          %1021 = vmatmul.f32.gmra.mxu0 %v967
          %v1022 = vpop.f32.mrf.mxu0
          %v1023 = vadd.f32 %v988, %v1022
          %1024 = vmatmul.f32.gmra.mxu0 %v968
          %v1025 = vpop.f32.mrf.mxu0
          %v1026 = vadd.f32 %v988, %v1025
          %1027 = vmatmul.f32.gmra.mxu0 %v969
          %v1028 = vpop.f32.mrf.mxu0
          %v1029 = vadd.f32 %v988, %v1028
          %1030 = vdwg.mxu0
          %s1031 = scalar_lea.vmem [#allocation14], %s461
          %1032 = vst [vmem:[%s1031] sm:$0xff] %v1008
          %1033 = vst [vmem:[%s1031 + $0x8] sm:$0xff] %v1011
          %1034 = vst [vmem:[%s1031 + $0x10] sm:$0xff] %v1014
          %1035 = vst [vmem:[%s1031 + $0x18] sm:$0xff] %v1017
          %1036 = vst [vmem:[%s1031 + $0x20] sm:$0xff] %v1020
          %1037 = vst [vmem:[%s1031 + $0x28] sm:$0xff] %v1023
          %1038 = vst [vmem:[%s1031 + $0x30] sm:$0xff] %v1026
          %1039 = vst [vmem:[%s1031 + $0x38] sm:$0xff] %v1029
        $region84: #{tpu_custom_call.1} parent=47 // pred_fallthru
          _
        // Predicated region
        $region85: #{tpu_custom_call.1} parent=47 // pred_check
          %p1040 = pneg %p237
        $region86: #{tpu_custom_call.1} parent=47 // pred_check_branch
          %1042 = sbr.rel (%p1040) target = $region88
        $region87: #{tpu_custom_call.1} parent=47 // pred_region
          %1044 = vsyncadd [#allocation7], 0
          %s1045 = sshll.u32 [#allocation14], 4
          %s1046 = int_to_ptr.vmem [resolvable:$true] %s1045
          %s1047 = sshll.u32 %s7, 4
          %s1048 = int_to_ptr.hbm [resolvable:$true] %s1047
          %1053 = dma.vmem_to_hbm [thread:$0]  %s1046, 1024, %s1048, [#allocation7], 128, 128, 8
        $region88: #{tpu_custom_call.1} parent=47 // pred_fallthru
          _
        // Predicated region
        $region89: #{tpu_custom_call.1} parent=47 // pred_check
          %p1054 = pneg %p237
        $region90: #{tpu_custom_call.1} parent=47 // pred_check_branch
          %1056 = sbr.rel (%p1054) target = $region92
        $region91: #{tpu_custom_call.1} parent=47 // pred_region
          %1058 = dma.done [#allocation7], 1024
        $region92: #{tpu_custom_call.1} parent=47 // pred_fallthru
          _
      $region48: #{tpu_custom_call.1} parent=5 // pred_fallthru
        _
      %p1059 = scmp.le.s32.totalorder 2, %s23
      // Predicated region
      $region93: #{tpu_custom_call.1} parent=5 // pred_check
        %p1060 = pneg %p1059
      $region94: #{tpu_custom_call.1} parent=5 // pred_check_branch
        %1062 = sbr.rel (%p1060) target = $region96
      $region95: #{tpu_custom_call.1} parent=5 // pred_region
        %s1063 = ssub.s32 %s23, 2
      $region96: #{tpu_custom_call.1} parent=5 // pred_fallthru
        _
    $region6: #{tpu_custom_call.1} parent=1 // loop_footer
      %s27 = sadd.s32 1, %s23
    $region7: #{tpu_custom_call.1} parent=1 // loop_footer_branch
      %22 = sbr.rel target = $region3
    $region8: #{tpu_custom_call.1} parent=1 // loop_exit
      _
    %1064 = vsyncpa [#allocation6], 1
    %s1065 = scalar_lea.sflag [#allocation6], 1
    %1066 = vsyncpa %s1065, 1
    %1067 = vsyncpa [#allocation9], 1
    %s1068 = scalar_lea.sflag [#allocation9], 1
    %1069 = vsyncpa %s1068, 1
    %1070 = vsyncpa [#allocation12], 1
    %s1071 = scalar_lea.sflag [#allocation12], 1
    %1072 = vsyncpa %s1071, 1
    %1073 = vsyncpa [#allocation7], 1
    %s1074 = scalar_lea.sflag [#allocation7], 1
    %1075 = vsyncpa %s1074, 1

</llo_original>
